<compile_context>
chip_gen: v5e
topology: v5e:2x2
jax: 0.10.0
libtpu: 0.0.40
codegen_flags: <defaults>
</compile_context>

<pallas_src>
import functools
import math

import jax
import jax.numpy as jnp
from jax.experimental import pallas as pl
from jax.experimental.pallas import tpu as pltpu


def _log_sigmoid(z):
    # Single-path numerically stable log(sigmoid(z)) = -(relu(-z) + log1p(exp(-|z|)))
    return -(jnp.maximum(-z, 0.0) + jnp.log1p(jnp.exp(-jnp.abs(z))))


def _unified_fl_kernel(x_ref, y_ref, focal_ref, tversky_ref,
                       focal_acc, tp_acc, den_acc, *,
                       delta, gamma, smooth_nr, smooth_dr,
                       n_spatial, tile_elems, needs_mask, binary_target):
    j = pl.program_id(1)

    @pl.when(j == 0)
    def _():
        focal_acc[...] = jnp.zeros_like(focal_acc)
        tp_acc[...] = jnp.zeros_like(tp_acc)
        den_acc[...] = jnp.zeros_like(den_acc)

    x = x_ref[0].astype(jnp.float32)          # (C, TR, 128)
    y = y_ref[0].astype(jnp.float32)          # (C, TR, 128) one-hot target
    tr = x.shape[1]

    if needs_mask:
        # Validity mask for zero-padded spatial tail (padding added in wrapper).
        row = jax.lax.broadcasted_iota(jnp.int32, (tr, 128), 0)
        lane = jax.lax.broadcasted_iota(jnp.int32, (tr, 128), 1)
        valid = (row * 128 + lane) < (n_spatial - j * tile_elems)
        maskf = valid.astype(jnp.float32)     # (TR, 128); broadcasts over C
    else:
        maskf = None

    # ---------------- focal (MONAI sigmoid focal loss) ----------------
    xy = x * y
    lsx = _log_sigmoid(x)                     # exp + log1p   (EUP)
    bce = x - xy - lsx                        # BCE with logits
    if binary_target:
        # logsigmoid(-x*(2y-1)) == logsigmoid(x) - x*y   for y in {0, 1}
        invprobs = lsx - xy
    else:
        invprobs = _log_sigmoid(-x * (2.0 * y - 1.0))
    fl = jnp.exp(gamma * invprobs) * bce      # exp           (EUP)
    if maskf is not None:
        fl = fl * maskf
    focal_acc[...] += jnp.sum(fl, axis=0)     # class reduce only (VPU)

    # --------- tversky partial sums (softmax over channel axis) ---------
    m = jnp.max(x, axis=0, keepdims=True)     # (1, TR, 128)   (VPU)
    e = jnp.exp(x - m)                        # exp            (EUP)
    d = jnp.sum(e, axis=0, keepdims=True)
    r = pl.reciprocal(d, approx=True)
    r = r * (2.0 - d * r)                     # one Newton step -> ~f32 accuracy
    p = e * r                                 # softmax(x, channel)

    tp_acc[...] += p * y
    pm = p * maskf if maskf is not None else p
    # tp + alpha*fp + beta*fn == alpha*sum(p) + beta*sum(y)   (alpha+beta == 1)
    den_acc[...] += delta * pm + (1.0 - delta) * y

    @pl.when(j == pl.num_programs(1) - 1)
    def _():
        # Deferred XLU reductions, once per batch element.
        focal_ref[0] = jnp.sum(focal_acc[...], axis=0, keepdims=True)         # (1,128)
        tp = jnp.sum(jnp.sum(tp_acc[...], axis=1), axis=1, keepdims=True)     # (C,1)
        den = jnp.sum(jnp.sum(den_acc[...], axis=1), axis=1, keepdims=True)   # (C,1)
        score = 1.0 - (tp + smooth_nr) / (den + smooth_dr)                    # (C,1)
        tversky_ref[0] = (jnp.sum(score, axis=0, keepdims=True)
                          + jnp.zeros((1, 128), dtype=jnp.float32))


def _choose_tile_rows(n_sub, n_classes, max_tile_rows=None):
    """Rows (of 128 lanes) per spatial tile; ~2 MiB of f32 logits per block."""
    budget = (2 * 1024 * 1024) // (max(1, n_classes) * 128 * 4)
    budget = max(16, (budget // 16) * 16)
    if max_tile_rows is not None:
        budget = max(16, (int(max_tile_rows) // 16) * 16)
    if n_sub <= budget:
        return n_sub, 1                      # single spatial tile (full extent)
    n_tiles = -(-n_sub // budget)
    return budget, n_tiles


def unified_fl(x, y, *, delta=0.6, gamma=2.0, lambda_=0.75,
               smooth_nr=1e-5, smooth_dr=1e-5,
               binary_target=True, max_tile_rows=None):
    """x: logits (B, C, *spatial); y: one-hot target (B, C, *spatial).

    Pass y as bfloat16 one-hot (exact) to halve its HBM traffic.
    Set binary_target=False for soft (non {0,1}) targets.
    """
    B, C = int(x.shape[0]), int(x.shape[1])
    S = int(math.prod(x.shape[2:]))

    xf = x.reshape(B, C, S)
    yf = y.reshape(B, C, S)

    n_sub = -(-S // 128)                       # 128-lane rows needed
    tile_rows, n_tiles = _choose_tile_rows(n_sub, C, max_tile_rows)
    s_pad = n_tiles * tile_rows * 128
    needs_mask = (s_pad != S)
    if needs_mask:
        # TODO(synk): this one-time pad copy could be avoided with ragged edge
        # blocks + in-kernel sanitization; kept for robustness.
        xf = jnp.pad(xf, ((0, 0), (0, 0), (0, s_pad - S)))
        yf = jnp.pad(yf, ((0, 0), (0, 0), (0, s_pad - S)))
    xf = xf.reshape(B, C, n_tiles * tile_rows, 128)
    yf = yf.reshape(B, C, n_tiles * tile_rows, 128)

    kernel = functools.partial(
        _unified_fl_kernel,
        delta=float(delta), gamma=float(gamma),
        smooth_nr=float(smooth_nr), smooth_dr=float(smooth_dr),
        n_spatial=int(S), tile_elems=int(tile_rows * 128),
        needs_mask=bool(needs_mask), binary_target=bool(binary_target))

    n_elems = B * C * n_tiles * tile_rows * 128
    cost = pl.CostEstimate(
        flops=int(30 * n_elems),
        transcendentals=int(4 * n_elems),
        bytes_accessed=int(xf.size * xf.dtype.itemsize
                           + yf.size * yf.dtype.itemsize
                           + 2 * B * 128 * 4))

    focal_part, tversky_part = pl.pallas_call(
        kernel,
        out_shape=(jax.ShapeDtypeStruct((B, 1, 128), jnp.float32),
                   jax.ShapeDtypeStruct((B, 1, 128), jnp.float32)),
        grid_spec=pltpu.PrefetchScalarGridSpec(
            num_scalar_prefetch=0,
            grid=(B, n_tiles),
            in_specs=[
                pl.BlockSpec((1, C, tile_rows, 128), lambda b, j: (b, 0, j, 0)),
                pl.BlockSpec((1, C, tile_rows, 128), lambda b, j: (b, 0, j, 0)),
            ],
            out_specs=[
                pl.BlockSpec((1, 1, 128), lambda b, j: (b, 0, 0)),
                pl.BlockSpec((1, 1, 128), lambda b, j: (b, 0, 0)),
            ],
            scratch_shapes=[
                pltpu.VMEM((tile_rows, 128), jnp.float32),      # focal partial
                pltpu.VMEM((C, tile_rows, 128), jnp.float32),   # tp partial
                pltpu.VMEM((C, tile_rows, 128), jnp.float32),   # weighted denom
            ]),
        compiler_params=pltpu.CompilerParams(
            dimension_semantics=("parallel", "arbitrary"),
            vmem_limit_bytes=32 * 1024 * 1024),
        cost_estimate=cost,
    )(xf, yf)

    focal_mean = jnp.sum(focal_part) / float(B * C * S)
    tversky_mean = jnp.sum(tversky_part[:, 0, 0]) / float(B * C)
    loss = lambda_ * delta * focal_mean + (1.0 - lambda_) * tversky_mean
    return loss.astype(jnp.float32)


def unified_fl_ref(x, y, delta=0.6, gamma=2.0, lambda_=0.75,
                   smooth_nr=1e-5, smooth_dr=1e-5):
    """Pure-JAX reference mirroring the PyTorch/MONAI module (NCHW inputs)."""
    x = x.astype(jnp.float32)
    y = y.astype(jnp.float32)
    ls = jax.nn.log_sigmoid
    bce = x - x * y - ls(x)
    fl = jnp.exp(gamma * ls(-x * (2.0 * y - 1.0))) * bce
    focal = jnp.mean(fl)

    p = jax.nn.softmax(x, axis=1)
    red = (2, 3)
    tp = jnp.sum(p * y, red)
    fp = delta * jnp.sum(p * (1.0 - y), red)
    fn = (1.0 - delta) * jnp.sum((1.0 - p) * y, red)
    score = 1.0 - (tp + smooth_nr) / (tp + fp + fn + smooth_dr)
    tversky = jnp.mean(score)
    return lambda_ * delta * focal + (1.0 - lambda_) * tversky


if __name__ == "__main__":
    key = jax.random.PRNGKey(0)
    k1, k2, k3, k4 = jax.random.split(key, 4)

    # Case 1: lane-aligned spatial extent (no padding / masking path).
    B, C, H, W = 2, 4, 16, 16
    x = jax.random.normal(k1, (B, C, H, W), dtype=jnp.float32)           # logits
    labels = jax.random.randint(k2, (B, H, W), 0, C)
    y = jnp.transpose(jax.nn.one_hot(labels, C, dtype=jnp.bfloat16),
                      (0, 3, 1, 2))                                       # NCHW one-hot
    out = jax.block_until_ready(unified_fl(x, y))
    ref = unified_fl_ref(x, y.astype(jnp.float32))
    assert jnp.allclose(out, ref, rtol=1e-4, atol=1e-5), (out, ref)

    # Case 2: unaligned spatial extent + forced multi-tile (padding/mask path).
    B2, C2, H2, W2 = 1, 3, 47, 49
    x2 = jax.random.normal(k3, (B2, C2, H2, W2), dtype=jnp.float32)
    labels2 = jax.random.randint(k4, (B2, H2, W2), 0, C2)
    y2 = jnp.transpose(jax.nn.one_hot(labels2, C2, dtype=jnp.bfloat16),
                       (0, 3, 1, 2))
    out2 = jax.block_until_ready(unified_fl(x2, y2, max_tile_rows=16))
    ref2 = unified_fl_ref(x2, y2.astype(jnp.float32))
    assert jnp.allclose(out2, ref2, rtol=1e-4, atol=1e-5), (out2, ref2)

    print("KERNEL_OK")
</pallas_src>

<mosaic_0001>
module attributes {stable_mosaic.version = 11 : i64} {
  func.func @_unified_fl_kernel(%arg0: i32, %arg1: i32, %arg2: memref<1x4x2x128xf32, #tpu.memory_space<vmem>>, %arg3: memref<1x4x2x128xbf16, #tpu.memory_space<vmem>>, %arg4: memref<1x1x128xf32, #tpu.memory_space<vmem>>, %arg5: memref<1x1x128xf32, #tpu.memory_space<vmem>>, %arg6: memref<2x128xf32, #tpu.memory_space<vmem>>, %arg7: memref<4x2x128xf32, #tpu.memory_space<vmem>>, %arg8: memref<4x2x128xf32, #tpu.memory_space<vmem>>) attributes {dimension_semantics = [#tpu.dimension_semantics<parallel>, #tpu.dimension_semantics<arbitrary>], iteration_bounds = array<i64: 2, 1>, scalar_prefetch = 0 : i64, scratch_operands = 3 : i64, tpu.core_type = #tpu.core_type<tc>, window_params = [{transform_indices = @transform_0, window_bounds = array<i64: 1, 4, 2, 128>}, {transform_indices = @transform_1, window_bounds = array<i64: 1, 4, 2, 128>}, {transform_indices = @transform_2, window_bounds = array<i64: 1, 1, 128>}, {transform_indices = @transform_3, window_bounds = array<i64: 1, 1, 128>}]} {
    %c0_i32 = arith.constant 0 : i32
    %0 = arith.cmpi eq, %arg1, %c0_i32 : i32
    %1 = arith.extui %0 : i1 to i32
    %c0_i32_0 = arith.constant 0 : i32
    %2 = arith.cmpi ne, %1, %c0_i32_0 : i32
    scf.if %2 {
      %cst_36 = arith.constant 0.000000e+00 : f32
      %61 = vector.broadcast %cst_36 : f32 to vector<2x128xf32>
      %c0_37 = arith.constant 0 : index
      %c0_38 = arith.constant 0 : index
      %62 = vector.load %arg6[%c0_37, %c0_38] : memref<2x128xf32, #tpu.memory_space<vmem>>, vector<2x128xf32>
      tpu.vector_store %arg6[%c0_37, %c0_38], %61 {strides = array<i32>} : memref<2x128xf32, #tpu.memory_space<vmem>>, vector<2x128xf32>,
      %cst_39 = arith.constant 0.000000e+00 : f32
      %63 = vector.broadcast %cst_39 : f32 to vector<4x2x128xf32>
      %c0_40 = arith.constant 0 : index
      %c0_41 = arith.constant 0 : index
      %c0_42 = arith.constant 0 : index
      %64 = vector.load %arg7[%c0_40, %c0_41, %c0_42] : memref<4x2x128xf32, #tpu.memory_space<vmem>>, vector<4x2x128xf32>
      tpu.vector_store %arg7[%c0_40, %c0_41, %c0_42], %63 {strides = array<i32>} : memref<4x2x128xf32, #tpu.memory_space<vmem>>, vector<4x2x128xf32>,
      %cst_43 = arith.constant 0.000000e+00 : f32
      %65 = vector.broadcast %cst_43 : f32 to vector<4x2x128xf32>
      %c0_44 = arith.constant 0 : index
      %c0_45 = arith.constant 0 : index
      %c0_46 = arith.constant 0 : index
      %66 = vector.load %arg8[%c0_44, %c0_45, %c0_46] : memref<4x2x128xf32, #tpu.memory_space<vmem>>, vector<4x2x128xf32>
      tpu.vector_store %arg8[%c0_44, %c0_45, %c0_46], %65 {strides = array<i32>} : memref<4x2x128xf32, #tpu.memory_space<vmem>>, vector<4x2x128xf32>,
    } else {
    }
    %c0 = arith.constant 0 : index
    %c0_1 = arith.constant 0 : index
    %c0_2 = arith.constant 0 : index
    %c0_3 = arith.constant 0 : index
    %3 = vector.load %arg2[%c0, %c0_1, %c0_2, %c0_3] : memref<1x4x2x128xf32, #tpu.memory_space<vmem>>, vector<1x4x2x128xf32>
    %4 = vector.shape_cast %3 : vector<1x4x2x128xf32> to vector<4x2x128xf32>
    %c0_4 = arith.constant 0 : index
    %c0_5 = arith.constant 0 : index
    %c0_6 = arith.constant 0 : index
    %c0_7 = arith.constant 0 : index
    %5 = vector.load %arg3[%c0_4, %c0_5, %c0_6, %c0_7] : memref<1x4x2x128xbf16, #tpu.memory_space<vmem>>, vector<1x4x2x128xbf16>
    %6 = vector.shape_cast %5 : vector<1x4x2x128xbf16> to vector<4x2x128xbf16>
    %7 = arith.extf %6 : vector<4x2x128xbf16> to vector<4x2x128xf32>
    %8 = arith.mulf %4, %7 : vector<4x2x128xf32>
    %cst = arith.constant 0.000000e+00 : f32
    %9 = vector.broadcast %cst : f32 to vector<4x2x128xf32>
    %10 = arith.subf %9, %4 : vector<4x2x128xf32>
    %cst_8 = arith.constant 0.000000e+00 : f32
    %11 = vector.broadcast %cst_8 : f32 to vector<4x2x128xf32>
    %12 = arith.maximumf %10, %11 : vector<4x2x128xf32>
    %13 = math.absf %4 : vector<4x2x128xf32>
    %cst_9 = arith.constant 0.000000e+00 : f32
    %14 = vector.broadcast %cst_9 : f32 to vector<4x2x128xf32>
    %15 = arith.subf %14, %13 : vector<4x2x128xf32>
    %16 = math.exp %15 : vector<4x2x128xf32>
    %17 = math.log1p %16 : vector<4x2x128xf32>
    %18 = arith.addf %12, %17 : vector<4x2x128xf32>
    %cst_10 = arith.constant 0.000000e+00 : f32
    %19 = vector.broadcast %cst_10 : f32 to vector<4x2x128xf32>
    %20 = arith.subf %19, %18 : vector<4x2x128xf32>
    %21 = arith.subf %4, %8 : vector<4x2x128xf32>
    %22 = arith.subf %21, %20 : vector<4x2x128xf32>
    %23 = arith.subf %20, %8 : vector<4x2x128xf32>
    %cst_11 = arith.constant 2.000000e+00 : f32
    %24 = vector.broadcast %cst_11 : f32 to vector<4x2x128xf32>
    %25 = arith.mulf %24, %23 : vector<4x2x128xf32>
    %26 = math.exp %25 : vector<4x2x128xf32>
    %27 = arith.mulf %26, %22 : vector<4x2x128xf32>
    %c0_12 = arith.constant 0 : index
    %c0_13 = arith.constant 0 : index
    %28 = vector.load %arg6[%c0_12, %c0_13] : memref<2x128xf32, #tpu.memory_space<vmem>>, vector<2x128xf32>
    %cst_14 = arith.constant dense<0.000000e+00> : vector<2x128xf32>
    %29 = vector.multi_reduction <add>, %27, %cst_14 [0] : vector<4x2x128xf32> to vector<2x128xf32>
    %30 = arith.addf %28, %29 : vector<2x128xf32>
    %c0_15 = arith.constant 0 : index
    %c0_16 = arith.constant 0 : index
    %31 = vector.load %arg6[%c0_15, %c0_16] : memref<2x128xf32, #tpu.memory_space<vmem>>, vector<2x128xf32>
    tpu.vector_store %arg6[%c0_15, %c0_16], %30 {strides = array<i32>} : memref<2x128xf32, #tpu.memory_space<vmem>>, vector<2x128xf32>,
    %cst_17 = arith.constant dense<0xFF800000> : vector<2x128xf32>
    %32 = vector.multi_reduction <maximumf>, %4, %cst_17 [0] : vector<4x2x128xf32> to vector<2x128xf32>
    %33 = vector.shape_cast %32 : vector<2x128xf32> to vector<1x2x128xf32>
    %34 = vector.broadcast %33 : vector<1x2x128xf32> to vector<4x2x128xf32>
    %35 = arith.subf %4, %34 : vector<4x2x128xf32>
    %36 = math.exp %35 : vector<4x2x128xf32>
    %cst_18 = arith.constant dense<0.000000e+00> : vector<2x128xf32>
    %37 = vector.multi_reduction <add>, %36, %cst_18 [0] : vector<4x2x128xf32> to vector<2x128xf32>
    %38 = vector.shape_cast %37 : vector<2x128xf32> to vector<1x2x128xf32>
    %39 = tpu.reciprocal %38 {approx = true} : vector<1x2x128xf32> -> vector<1x2x128xf32>
    %40 = arith.mulf %38, %39 : vector<1x2x128xf32>
    %cst_19 = arith.constant 2.000000e+00 : f32
    %41 = vector.broadcast %cst_19 : f32 to vector<1x2x128xf32>
    %42 = arith.subf %41, %40 : vector<1x2x128xf32>
    %43 = arith.mulf %39, %42 : vector<1x2x128xf32>
    %44 = vector.broadcast %43 : vector<1x2x128xf32> to vector<4x2x128xf32>
    %45 = arith.mulf %36, %44 : vector<4x2x128xf32>
    %c0_20 = arith.constant 0 : index
    %c0_21 = arith.constant 0 : index
    %c0_22 = arith.constant 0 : index
    %46 = vector.load %arg7[%c0_20, %c0_21, %c0_22] : memref<4x2x128xf32, #tpu.memory_space<vmem>>, vector<4x2x128xf32>
    %47 = arith.mulf %45, %7 : vector<4x2x128xf32>
    %48 = arith.addf %46, %47 : vector<4x2x128xf32>
    %c0_23 = arith.constant 0 : index
    %c0_24 = arith.constant 0 : index
    %c0_25 = arith.constant 0 : index
    %49 = vector.load %arg7[%c0_23, %c0_24, %c0_25] : memref<4x2x128xf32, #tpu.memory_space<vmem>>, vector<4x2x128xf32>
    tpu.vector_store %arg7[%c0_23, %c0_24, %c0_25], %48 {strides = array<i32>} : memref<4x2x128xf32, #tpu.memory_space<vmem>>, vector<4x2x128xf32>,
    %c0_26 = arith.constant 0 : index
    %c0_27 = arith.constant 0 : index
    %c0_28 = arith.constant 0 : index
    %50 = vector.load %arg8[%c0_26, %c0_27, %c0_28] : memref<4x2x128xf32, #tpu.memory_space<vmem>>, vector<4x2x128xf32>
    %cst_29 = arith.constant 6.000000e-01 : f32
    %51 = vector.broadcast %cst_29 : f32 to vector<4x2x128xf32>
    %52 = arith.mulf %51, %45 : vector<4x2x128xf32>
    %cst_30 = arith.constant 4.000000e-01 : f32
    %53 = vector.broadcast %cst_30 : f32 to vector<4x2x128xf32>
    %54 = arith.mulf %53, %7 : vector<4x2x128xf32>
    %55 = arith.addf %52, %54 : vector<4x2x128xf32>
    %56 = arith.addf %50, %55 : vector<4x2x128xf32>
    %c0_31 = arith.constant 0 : index
    %c0_32 = arith.constant 0 : index
    %c0_33 = arith.constant 0 : index
    %57 = vector.load %arg8[%c0_31, %c0_32, %c0_33] : memref<4x2x128xf32, #tpu.memory_space<vmem>>, vector<4x2x128xf32>
    tpu.vector_store %arg8[%c0_31, %c0_32, %c0_33], %56 {strides = array<i32>} : memref<4x2x128xf32, #tpu.memory_space<vmem>>, vector<4x2x128xf32>,
    %c0_i32_34 = arith.constant 0 : i32
    %58 = arith.cmpi eq, %arg1, %c0_i32_34 : i32
    %59 = arith.extui %58 : i1 to i32
    %c0_i32_35 = arith.constant 0 : i32
    %60 = arith.cmpi ne, %59, %c0_i32_35 : i32
    scf.if %60 {
      %c0_36 = arith.constant 0 : index
      %c0_37 = arith.constant 0 : index
      %61 = vector.load %arg6[%c0_36, %c0_37] : memref<2x128xf32, #tpu.memory_space<vmem>>, vector<2x128xf32>
      %cst_38 = arith.constant dense<0.000000e+00> : vector<128xf32>
      %62 = vector.multi_reduction <add>, %61, %cst_38 [0] : vector<2x128xf32> to vector<128xf32>
      %63 = vector.shape_cast %62 : vector<128xf32> to vector<1x128xf32>
      %c0_39 = arith.constant 0 : index
      %c0_40 = arith.constant 0 : index
      %c0_41 = arith.constant 0 : index
      %64 = vector.load %arg4[%c0_39, %c0_40, %c0_41] : memref<1x1x128xf32, #tpu.memory_space<vmem>>, vector<1x1x128xf32>
      %65 = vector.shape_cast %64 : vector<1x1x128xf32> to vector<1x128xf32>
      %66 = vector.shape_cast %63 : vector<1x128xf32> to vector<1x1x128xf32>
      tpu.vector_store %arg4[%c0_39, %c0_40, %c0_41], %66 {strides = array<i32>} : memref<1x1x128xf32, #tpu.memory_space<vmem>>, vector<1x1x128xf32>,
      %c0_42 = arith.constant 0 : index
      %c0_43 = arith.constant 0 : index
      %c0_44 = arith.constant 0 : index
      %67 = vector.load %arg7[%c0_42, %c0_43, %c0_44] : memref<4x2x128xf32, #tpu.memory_space<vmem>>, vector<4x2x128xf32>
      %cst_45 = arith.constant dense<0.000000e+00> : vector<4x128xf32>
      %68 = vector.multi_reduction <add>, %67, %cst_45 [1] : vector<4x2x128xf32> to vector<4x128xf32>
      %cst_46 = arith.constant dense<0.000000e+00> : vector<4xf32>
      %69 = vector.multi_reduction <add>, %68, %cst_46 [1] : vector<4x128xf32> to vector<4xf32>
      %70 = vector.shape_cast %69 : vector<4xf32> to vector<4x1xf32>
      %c0_47 = arith.constant 0 : index
      %c0_48 = arith.constant 0 : index
      %c0_49 = arith.constant 0 : index
      %71 = vector.load %arg8[%c0_47, %c0_48, %c0_49] : memref<4x2x128xf32, #tpu.memory_space<vmem>>, vector<4x2x128xf32>
      %cst_50 = arith.constant dense<0.000000e+00> : vector<4x128xf32>
      %72 = vector.multi_reduction <add>, %71, %cst_50 [1] : vector<4x2x128xf32> to vector<4x128xf32>
      %cst_51 = arith.constant dense<0.000000e+00> : vector<4xf32>
      %73 = vector.multi_reduction <add>, %72, %cst_51 [1] : vector<4x128xf32> to vector<4xf32>
      %74 = vector.shape_cast %73 : vector<4xf32> to vector<4x1xf32>
      %cst_52 = arith.constant 9.99999974E-6 : f32
      %75 = vector.broadcast %cst_52 : f32 to vector<4x1xf32>
      %76 = arith.addf %70, %75 : vector<4x1xf32>
      %cst_53 = arith.constant 9.99999974E-6 : f32
      %77 = vector.broadcast %cst_53 : f32 to vector<4x1xf32>
      %78 = arith.addf %74, %77 : vector<4x1xf32>
      %79 = arith.divf %76, %78 : vector<4x1xf32>
      %cst_54 = arith.constant 1.000000e+00 : f32
      %80 = vector.broadcast %cst_54 : f32 to vector<4x1xf32>
      %81 = arith.subf %80, %79 : vector<4x1xf32>
      %cst_55 = arith.constant dense<0.000000e+00> : vector<1xf32>
      %82 = vector.multi_reduction <add>, %81, %cst_55 [0] : vector<4x1xf32> to vector<1xf32>
      %83 = vector.shape_cast %82 : vector<1xf32> to vector<1x1xf32>
      %cst_56 = arith.constant 0.000000e+00 : f32
      %84 = vector.broadcast %cst_56 : f32 to vector<1x128xf32>
      %85 = vector.broadcast %83 : vector<1x1xf32> to vector<1x128xf32>
      %86 = arith.addf %85, %84 : vector<1x128xf32>
      %c0_57 = arith.constant 0 : index
      %c0_58 = arith.constant 0 : index
      %c0_59 = arith.constant 0 : index
      %87 = vector.load %arg5[%c0_57, %c0_58, %c0_59] : memref<1x1x128xf32, #tpu.memory_space<vmem>>, vector<1x1x128xf32>
      %88 = vector.shape_cast %87 : vector<1x1x128xf32> to vector<1x128xf32>
      %89 = vector.shape_cast %86 : vector<1x128xf32> to vector<1x1x128xf32>
      tpu.vector_store %arg5[%c0_57, %c0_58, %c0_59], %89 {strides = array<i32>} : memref<1x1x128xf32, #tpu.memory_space<vmem>>, vector<1x1x128xf32>,
    } else {
    }
    return
  }
  func.func @transform_0(%arg0: i32, %arg1: i32) -> (i32, i32, i32, i32) {
    %c0_i32 = arith.constant 0 : i32
    %c0_i32_0 = arith.constant 0 : i32
    %c0_i32_1 = arith.constant 0 : i32
    return %arg0, %c0_i32, %arg1, %c0_i32_0 : i32, i32, i32, i32
  }
  func.func @transform_1(%arg0: i32, %arg1: i32) -> (i32, i32, i32, i32) {
    %c0_i32 = arith.constant 0 : i32
    %c0_i32_0 = arith.constant 0 : i32
    %c0_i32_1 = arith.constant 0 : i32
    return %arg0, %c0_i32, %arg1, %c0_i32_0 : i32, i32, i32, i32
  }
  func.func @transform_2(%arg0: i32, %arg1: i32) -> (i32, i32, i32) {
    %c0_i32 = arith.constant 0 : i32
    %c0_i32_0 = arith.constant 0 : i32
    %c0_i32_1 = arith.constant 0 : i32
    return %arg0, %c0_i32, %c0_i32_0 : i32, i32, i32
  }
  func.func @transform_3(%arg0: i32, %arg1: i32) -> (i32, i32, i32) {
    %c0_i32 = arith.constant 0 : i32
    %c0_i32_0 = arith.constant 0 : i32
    %c0_i32_1 = arith.constant 0 : i32
    return %arg0, %c0_i32, %c0_i32_0 : i32, i32, i32
  }
}

</mosaic_0001>

<llo_original>
// kernel: tpu_custom_call.1
$region0: #{tpu_custom_call.1}
  #allocation0 [shape = 'u32[]', space=smem, size = 0x4, offset = 0x4, fixed_abs, tag = 'smem constant byte address 0x4 - core index']
  #allocation1 [shape = 'u32[72,128]{1,0:T(1,128)}', space=vmem, size = 0x9000, scoped, tag = 'internal scratch']
  #allocation2 [shape = 'f32[2,128]{1,0:T(2,128)}', space=vmem, size = 0x400, scoped, tag = 'scratch operand']
  #allocation3 [shape = 'f32[4,2,128]{2,1,0:T(2,128)}', space=vmem, size = 0x1000, scoped, tag = 'scratch operand']
  #allocation4 [shape = 'f32[4,2,128]{2,1,0:T(2,128)}', space=vmem, size = 0x1000, scoped, tag = 'scratch operand']
  %s0 = inlined_call_operand.hbm [shape: f32[2,4,2,128], index: 0, kind: input, shape index: {}]
  %s1 = inlined_call_operand.hbm [shape: bf16[2,4,2,128], index: 1, kind: input, shape index: {}]
  %s2 = inlined_call_operand.hbm [shape: f32[2,1,128], index: 2, kind: output, shape index: {0}]
  %s3 = inlined_call_operand.hbm [shape: f32[2,1,128], index: 3, kind: output, shape index: {1}]
  %4 = xla_tuple %s2, %s3
  %s5 = sld [smem:[#allocation0]]
  $region65: #{tpu_custom_call.1} parent=0
    _
  %s7 = ssub.s32 1, %s5
  %s8 = scalar_select 0, %s7, %s5
  $region1: #{tpu_custom_call.1} parent=0
    #allocation5 [shape = 'u8[8192]{0}', space=vmem, size = 0x2000, scoped, tag = 'input window, operand 0']
    #allocation6 [shape = 's32[2]{0}', space=sflag, size = 0x8, scoped, tag = 'scoped memory for tpu_custom_call.1']
    #allocation7 [shape = 's32[2]{0}', space=sflag, size = 0x8, scoped, tag = 'scoped memory for tpu_custom_call.1']
    #allocation8 [shape = 'u8[4096]{0}', space=vmem, size = 0x1000, scoped, tag = 'input window, operand 1']
    #allocation9 [shape = 's32[2]{0}', space=sflag, size = 0x8, scoped, tag = 'scoped memory for tpu_custom_call.1']
    #allocation10 [shape = 'u8[1024]{0}', space=vmem, size = 0x400, scoped, tag = 'output window, operand 0']
    #allocation11 [shape = 'u8[1024]{0}', space=vmem, size = 0x400, scoped, tag = 'output window, operand 1']
    #allocation12 [shape = 's32[2]{0}', space=sflag, size = 0x8, scoped, tag = 'scoped memory for tpu_custom_call.1']
    %9 = vsyncpa [#allocation6], 0
    %s10 = scalar_lea.sflag [#allocation6], 1
    %11 = vsyncpa %s10, 0
    %12 = vsyncpa [#allocation9], 0
    %s13 = scalar_lea.sflag [#allocation9], 1
    %14 = vsyncpa %s13, 0
    %15 = vsyncpa [#allocation7], 0
    %s16 = scalar_lea.sflag [#allocation7], 1
    %17 = vsyncpa %s16, 0
    %18 = vsyncpa [#allocation12], 0
    %s19 = scalar_lea.sflag [#allocation12], 1
    %20 = vsyncpa %s19, 0
    loop: start=0, step=1, limit=4
    $region2: #{tpu_custom_call.1} parent=1 // loop_pre_header
      _
    $region3: #{tpu_custom_call.1} parent=1 // loop_header
      %s22 = sphi 0, %s26
      %p23 = scmp.ge.s32.totalorder %s22, 4
      %s29 = sphi 0, %s41
      %s30 = sphi 0, %s37
      %s31 = sphi 0, %s29
      %s32 = sphi 0, %s30
      %s33 = sphi 0, %s31
      %s34 = sphi 0, %s32
      %s46 = sphi 0, %s48
      %s49 = sphi 0, %s46
      %s50 = sphi 0, %s49
      %s66 = sphi 0, %s50
      %s74 = sphi 0, %s76
      %s77 = sphi 0, %s74
      %s78 = sphi 0, %s77
      %s94 = sphi 0, %s78
      %s100 = sphi 0, %s102
      %s103 = sphi 0, %s100
      %s104 = sphi 0, %s103
      %s120 = sphi 0, %s104
      %s126 = sphi 0, %s128
      %s129 = sphi 0, %s126
      %s130 = sphi 0, %s129
      %s146 = sphi 0, %s130
    $region4: #{tpu_custom_call.1} parent=1 // loop_header_branch
      %25 = sbr.rel (%p23) target = $region8
    $region5: #{tpu_custom_call.1} parent=1 // loop_body
      %s27 = ssub.s32 %s22, 1
      %s28 = ssub.s32 %s22, 2
      %s35 = sadd.s32 1, %s30
      %p36 = scmp.ge.s32.totalorder %s35, 1
      %s37 = scalar_select %p36, 0, %s35
      %s38 = sadd.s32 1, %s29
      %s39 = scalar_select %p36, %s38, %s29
      %p40 = scmp.ge.s32.totalorder %s39, 2
      %s41 = scalar_select %p40, 0, %s39
      %s42 = ssub.s32 %s29, %s41
      %s43 = ssub.s32 %s30, %s37
      %s44 = sor.u32 %s42, %s43
      %p45 = scmp.eq.s32.totalorder %s44, 0
      %s47 = sadd.s32 %s46, 1
      %s48 = scalar_select %p45, %s46, %s47
      %p51 = pneg %p45
      %p52 = scmp.eq.s32.totalorder %s22, 1
      %p53 = por %p51, %p52
      %p54 = scmp.ne.s32.totalorder %s46, %s49
      %p55 = scmp.eq.s32.totalorder %s22, 0
      %p56 = por %p54, %p55
      %p57 = scmp.ne.s32.totalorder %s46, %s49
      %p58 = scmp.eq.s32.totalorder %s27, 1
      %p59 = por %p57, %p58
      %p60 = scmp.ne.s32.totalorder %s49, %s50
      %p61 = scmp.eq.s32.totalorder %s27, 0
      %p62 = por %p60, %p61
      %p63 = scmp.ne.s32.totalorder %s49, %s50
      %p64 = scmp.eq.s32.totalorder %s28, 1
      %p65 = por %p63, %p64
      %p67 = scmp.ne.s32.totalorder %s50, %s66
      %p68 = scmp.eq.s32.totalorder %s28, 0
      %p69 = por %p67, %p68
      %s70 = ssub.s32 %s29, %s41
      %s71 = ssub.s32 %s30, %s37
      %s72 = sor.u32 %s70, %s71
      %p73 = scmp.eq.s32.totalorder %s72, 0
      %s75 = sadd.s32 %s74, 1
      %s76 = scalar_select %p73, %s74, %s75
      %p79 = pneg %p73
      %p80 = scmp.eq.s32.totalorder %s22, 1
      %p81 = por %p79, %p80
      %p82 = scmp.ne.s32.totalorder %s74, %s77
      %p83 = scmp.eq.s32.totalorder %s22, 0
      %p84 = por %p82, %p83
      %p85 = scmp.ne.s32.totalorder %s74, %s77
      %p86 = scmp.eq.s32.totalorder %s27, 1
      %p87 = por %p85, %p86
      %p88 = scmp.ne.s32.totalorder %s77, %s78
      %p89 = scmp.eq.s32.totalorder %s27, 0
      %p90 = por %p88, %p89
      %p91 = scmp.ne.s32.totalorder %s77, %s78
      %p92 = scmp.eq.s32.totalorder %s28, 1
      %p93 = por %p91, %p92
      %p95 = scmp.ne.s32.totalorder %s78, %s94
      %p96 = scmp.eq.s32.totalorder %s28, 0
      %p97 = por %p95, %p96
      %s98 = ssub.s32 %s29, %s41
      %p99 = scmp.eq.s32.totalorder %s98, 0
      %s101 = sadd.s32 %s100, 1
      %s102 = scalar_select %p99, %s100, %s101
      %p105 = pneg %p99
      %p106 = scmp.eq.s32.totalorder %s22, 1
      %p107 = por %p105, %p106
      %p108 = scmp.ne.s32.totalorder %s100, %s103
      %p109 = scmp.eq.s32.totalorder %s22, 0
      %p110 = por %p108, %p109
      %p111 = scmp.ne.s32.totalorder %s100, %s103
      %p112 = scmp.eq.s32.totalorder %s27, 1
      %p113 = por %p111, %p112
      %p114 = scmp.ne.s32.totalorder %s103, %s104
      %p115 = scmp.eq.s32.totalorder %s27, 0
      %p116 = por %p114, %p115
      %p117 = scmp.ne.s32.totalorder %s103, %s104
      %p118 = scmp.eq.s32.totalorder %s28, 1
      %p119 = por %p117, %p118
      %p121 = scmp.ne.s32.totalorder %s104, %s120
      %p122 = scmp.eq.s32.totalorder %s28, 0
      %p123 = por %p121, %p122
      %s124 = ssub.s32 %s29, %s41
      %p125 = scmp.eq.s32.totalorder %s124, 0
      %s127 = sadd.s32 %s126, 1
      %s128 = scalar_select %p125, %s126, %s127
      %p131 = pneg %p125
      %p132 = scmp.eq.s32.totalorder %s22, 1
      %p133 = por %p131, %p132
      %p134 = scmp.ne.s32.totalorder %s126, %s129
      %p135 = scmp.eq.s32.totalorder %s22, 0
      %p136 = por %p134, %p135
      %p137 = scmp.ne.s32.totalorder %s126, %s129
      %p138 = scmp.eq.s32.totalorder %s27, 1
      %p139 = por %p137, %p138
      %p140 = scmp.ne.s32.totalorder %s129, %s130
      %p141 = scmp.eq.s32.totalorder %s27, 0
      %p142 = por %p140, %p141
      %p143 = scmp.ne.s32.totalorder %s129, %s130
      %p144 = scmp.eq.s32.totalorder %s28, 1
      %p145 = por %p143, %p144
      %p147 = scmp.ne.s32.totalorder %s130, %s146
      %p148 = scmp.eq.s32.totalorder %s28, 0
      %p149 = por %p147, %p148
      %p150 = scmp.le.s32.totalorder 1, %s22
      %p151 = scmp.lt.s32.totalorder %s22, 3
      %p152 = pnand %p150, %p151
      %p153 = pneg %p152
      // Predicated region
      $region9: #{tpu_custom_call.1} parent=5 // pred_check
        _
      $region10: #{tpu_custom_call.1} parent=5 // pred_check_branch
        %155 = sbr.rel (%p152) target = $region12
      $region11: #{tpu_custom_call.1} parent=5 // pred_region
        %s156 = ssub.s32 %s22, 1
      $region12: #{tpu_custom_call.1} parent=5 // pred_fallthru
        _
      %p157 = scmp.lt.s32.totalorder %s22, 2
      // Predicated region
      $region13: #{tpu_custom_call.1} parent=5 // pred_check
        %p158 = pneg %p157
      $region14: #{tpu_custom_call.1} parent=5 // pred_check_branch
        %160 = sbr.rel (%p158) target = $region16
      $region15: #{tpu_custom_call.1} parent=5 // pred_region
        // Predicated region
        $region17: #{tpu_custom_call.1} parent=15 // pred_check
          %p161 = pneg %p56
        $region18: #{tpu_custom_call.1} parent=15 // pred_check_branch
          %163 = sbr.rel (%p161) target = $region20
        $region19: #{tpu_custom_call.1} parent=15 // pred_region
          %s164 = sand.u32 %s46, 1
          %s165 = scalar_lea.sflag [#allocation6], %s164
          %s166 = sand.u32 %s46, 1
          %s167 = smul.addr %s166, 8
          %s168 = scalar_lea.vmem [#allocation5], %s167
          %170 = vsyncadd %s165, 0
          %s171 = smul.addr %s29, 4
          %s172 = sadd.s32 %s30, %s171
          %s173 = smul.addr %s172, 2
          %s174 = scalar_lea.hbm %s0, %s173
          %s175 = sshll.u32 %s174, 4
          %s176 = int_to_ptr.hbm [resolvable:$true] %s175
          %s177 = sshll.u32 %s168, 4
          %s178 = int_to_ptr.vmem [resolvable:$true] %s177
          %183 = dma.hbm_to_vmem [thread:$0]  %s176, 128, %s178, %s165, 32, 32, 2
        $region20: #{tpu_custom_call.1} parent=15 // pred_fallthru
          _
        // Predicated region
        $region21: #{tpu_custom_call.1} parent=15 // pred_check
          %p184 = pneg %p84
        $region22: #{tpu_custom_call.1} parent=15 // pred_check_branch
          %186 = sbr.rel (%p184) target = $region24
        $region23: #{tpu_custom_call.1} parent=15 // pred_region
          %s187 = sand.u32 %s74, 1
          %s188 = scalar_lea.sflag [#allocation9], %s187
          %s189 = sand.u32 %s74, 1
          %s190 = smul.addr %s189, 4
          %s191 = scalar_lea.vmem [#allocation8], %s190
          %193 = vsyncadd %s188, 0
          %s194 = smul.addr %s29, 4
          %s195 = sadd.s32 %s30, %s194
          %s196 = scalar_lea.hbm %s1, %s195
          %s197 = sshll.u32 %s196, 4
          %s198 = int_to_ptr.hbm [resolvable:$true] %s197
          %s199 = sshll.u32 %s191, 4
          %s200 = int_to_ptr.vmem [resolvable:$true] %s199
          %205 = dma.hbm_to_vmem [thread:$0]  %s198, 64, %s200, %s188, 16, 16, 1
        $region24: #{tpu_custom_call.1} parent=15 // pred_fallthru
          _
      $region16: #{tpu_custom_call.1} parent=5 // pred_fallthru
        _
      %p206 = scmp.le.s32.totalorder 1, %s22
      %p207 = scmp.lt.s32.totalorder %s22, 3
      %p208 = pnand %p206, %p207
      %p209 = pneg %p208
      // Predicated region
      $region25: #{tpu_custom_call.1} parent=5 // pred_check
        _
      $region26: #{tpu_custom_call.1} parent=5 // pred_check_branch
        %211 = sbr.rel (%p208) target = $region28
      $region27: #{tpu_custom_call.1} parent=5 // pred_region
        %s212 = ssub.s32 %s22, 1
        %s213 = sand.u32 %s49, 1
        %s214 = scalar_lea.sflag [#allocation6], %s213
        %s215 = sand.u32 %s49, 1
        %s216 = smul.addr %s215, 8
        %s217 = scalar_lea.vmem [#allocation5], %s216
        // Predicated region
        $region29: #{tpu_custom_call.1} parent=27 // pred_check
          %p218 = pneg %p62
        $region30: #{tpu_custom_call.1} parent=27 // pred_check_branch
          %220 = sbr.rel (%p218) target = $region32
        $region31: #{tpu_custom_call.1} parent=27 // pred_region
          %222 = dma.done %s214, 128
        $region32: #{tpu_custom_call.1} parent=27 // pred_fallthru
          _
        %s223 = sand.u32 %s77, 1
        %s224 = scalar_lea.sflag [#allocation9], %s223
        %s225 = sand.u32 %s77, 1
        %s226 = smul.addr %s225, 4
        %s227 = scalar_lea.vmem [#allocation8], %s226
        // Predicated region
        $region33: #{tpu_custom_call.1} parent=27 // pred_check
          %p228 = pneg %p90
        $region34: #{tpu_custom_call.1} parent=27 // pred_check_branch
          %230 = sbr.rel (%p228) target = $region36
        $region35: #{tpu_custom_call.1} parent=27 // pred_region
          %232 = dma.done %s224, 64
        $region36: #{tpu_custom_call.1} parent=27 // pred_fallthru
          _
        %s233 = sand.u32 %s49, 1
        %s234 = scalar_lea.sflag [#allocation6], %s233
        %s235 = sand.u32 %s49, 1
        %s236 = smul.addr %s235, 8
        %s237 = scalar_lea.vmem [#allocation5], %s236
        %p238 = pneg %p62
        %p239 = pneg %p59
        %s240 = sand.u32 %s77, 1
        %s241 = scalar_lea.sflag [#allocation9], %s240
        %s242 = sand.u32 %s77, 1
        %s243 = smul.addr %s242, 4
        %s244 = scalar_lea.vmem [#allocation8], %s243
        %p245 = pneg %p90
        %p246 = pneg %p87
        %p247 = pneg %p116
        %p248 = pneg %p113
        %s249 = sand.u32 %s103, 1
        %s250 = scalar_lea.sflag [#allocation7], %s249
        %s251 = sand.u32 %s103, 1
        %s252 = scalar_lea.vmem [#allocation10], %s251
        %p253 = pneg %p142
        %p254 = pneg %p139
        %s255 = sand.u32 %s129, 1
        %s256 = scalar_lea.sflag [#allocation12], %s255
        %s257 = sand.u32 %s129, 1
        %s258 = scalar_lea.vmem [#allocation11], %s257
        %p259 = scmp.eq.s32.totalorder %s32, 0
        // Predicated region
        $region37: #{tpu_custom_call.1} parent=27 // pred_check
          %p260 = pneg %p259
        $region38: #{tpu_custom_call.1} parent=27 // pred_check_branch
          %262 = sbr.rel (%p260) target = $region40
        $region39: #{tpu_custom_call.1} parent=27 // pred_region
          %263 = vst [vmem:[#allocation2] sm:$0x3] 0.0
          %264 = vst [vmem:[#allocation3] sm:$0x3] 0.0
          %265 = vst [vmem:[#allocation3 + $0x2] sm:$0x3] 0.0
          %266 = vst [vmem:[#allocation3 + $0x4] sm:$0x3] 0.0
          %267 = vst [vmem:[#allocation3 + $0x6] sm:$0x3] 0.0
          %268 = vst [vmem:[#allocation4] sm:$0x3] 0.0
          %269 = vst [vmem:[#allocation4 + $0x2] sm:$0x3] 0.0
          %270 = vst [vmem:[#allocation4 + $0x4] sm:$0x3] 0.0
          %271 = vst [vmem:[#allocation4 + $0x6] sm:$0x3] 0.0
        $region40: #{tpu_custom_call.1} parent=27 // pred_fallthru
          _
        %v272 = vld [vmem:[%s217] sm:$0x3]
        %v273 = vld [vmem:[%s217 + $0x2] sm:$0x3]
        %v274 = vld [vmem:[%s217 + $0x4] sm:$0x3]
        %v275 = vld [vmem:[%s217 + $0x6] sm:$0x3]
        %v276 = vld [vmem:[%s227] sm:$0x1]
        %v277 = vld [vmem:[%s227 + $0x1] sm:$0x1]
        %v278 = vld [vmem:[%s227 + $0x2] sm:$0x1]
        %v279 = vld [vmem:[%s227 + $0x3] sm:$0x1]
        %v280 = vunpack.c.l.bf16 %v276
        %v281 = vunpack.c.l.bf16 %v277
        %v282 = vunpack.c.l.bf16 %v278
        %v283 = vunpack.c.l.bf16 %v279
        %v284 = vmul.f32 %v272, %v280
        %v285 = vmul.f32 %v273, %v281
        %v286 = vmul.f32 %v274, %v282
        %v287 = vmul.f32 %v275, %v283
        %v288 = vsub.f32 0.0, %v272
        %v289 = vsub.f32 0.0, %v273
        %v290 = vsub.f32 0.0, %v274
        %v291 = vsub.f32 0.0, %v275
        %v292 = vmax.f32 %v288, 0.0
        %v293 = vmax.f32 %v289, 0.0
        %v294 = vmax.f32 %v290, 0.0
        %v295 = vmax.f32 %v291, 0.0
        %v296 = vand.u32 2147483647, %v272
        %v297 = vand.u32 2147483647, %v273
        %v298 = vand.u32 2147483647, %v274
        %v299 = vand.u32 2147483647, %v275
        %v300 = vsub.f32 0.0, %v296
        %v301 = vsub.f32 0.0, %v297
        %v302 = vsub.f32 0.0, %v298
        %v303 = vsub.f32 0.0, %v299
        %v304 = vmul.f32 %v300, 1.442695
        %v305 = vpow.pop %v304
        %v306 = vmul.f32 %v301, 1.442695
        %v307 = vpow.pop %v306
        %v308 = vmul.f32 %v302, 1.442695
        %v309 = vpow.pop %v308
        %v310 = vmul.f32 %v303, 1.442695
        %v311 = vpow.pop %v310
        %v312 = vadd.f32 %v305, 1.0
        %v313 = vlog2.pop %v312
        %v314 = vmul.f32 %v313, 0.6931472
        %v315 = vmul.f32 -0.5, %v305
        %v316 = vadd.f32 %v315, 1.0
        %v317 = vmul.f32 %v316, %v305
        %v318 = vand.u32 2147483647, %v305
        %vm319 = vcmp.lt.f32.partialorder %v318, 0.0004427343
        %v320 = vsel %vm319, %v317, %v314
        %v321 = vadd.f32 %v307, 1.0
        %v322 = vlog2.pop %v321
        %v323 = vmul.f32 %v322, 0.6931472
        %v324 = vmul.f32 -0.5, %v307
        %v325 = vadd.f32 %v324, 1.0
        %v326 = vmul.f32 %v325, %v307
        %v327 = vand.u32 2147483647, %v307
        %vm328 = vcmp.lt.f32.partialorder %v327, 0.0004427343
        %v329 = vsel %vm328, %v326, %v323
        %v330 = vadd.f32 %v309, 1.0
        %v331 = vlog2.pop %v330
        %v332 = vmul.f32 %v331, 0.6931472
        %v333 = vmul.f32 -0.5, %v309
        %v334 = vadd.f32 %v333, 1.0
        %v335 = vmul.f32 %v334, %v309
        %v336 = vand.u32 2147483647, %v309
        %vm337 = vcmp.lt.f32.partialorder %v336, 0.0004427343
        %v338 = vsel %vm337, %v335, %v332
        %v339 = vadd.f32 %v311, 1.0
        %v340 = vlog2.pop %v339
        %v341 = vmul.f32 %v340, 0.6931472
        %v342 = vmul.f32 -0.5, %v311
        %v343 = vadd.f32 %v342, 1.0
        %v344 = vmul.f32 %v343, %v311
        %v345 = vand.u32 2147483647, %v311
        %vm346 = vcmp.lt.f32.partialorder %v345, 0.0004427343
        %v347 = vsel %vm346, %v344, %v341
        %v348 = vadd.f32 %v292, %v320
        %v349 = vadd.f32 %v293, %v329
        %v350 = vadd.f32 %v294, %v338
        %v351 = vadd.f32 %v295, %v347
        %v352 = vsub.f32 0.0, %v348
        %v353 = vsub.f32 0.0, %v349
        %v354 = vsub.f32 0.0, %v350
        %v355 = vsub.f32 0.0, %v351
        %v356 = vsub.f32 %v272, %v284
        %v357 = vsub.f32 %v273, %v285
        %v358 = vsub.f32 %v274, %v286
        %v359 = vsub.f32 %v275, %v287
        %v360 = vsub.f32 %v356, %v352
        %v361 = vsub.f32 %v357, %v353
        %v362 = vsub.f32 %v358, %v354
        %v363 = vsub.f32 %v359, %v355
        %v364 = vsub.f32 %v352, %v284
        %v365 = vsub.f32 %v353, %v285
        %v366 = vsub.f32 %v354, %v286
        %v367 = vsub.f32 %v355, %v287
        %v368 = vmul.f32 %v364, 2.0
        %v369 = vmul.f32 %v365, 2.0
        %v370 = vmul.f32 %v366, 2.0
        %v371 = vmul.f32 %v367, 2.0
        %v372 = vmul.f32 %v368, 1.442695
        %v373 = vpow.pop %v372
        %v374 = vmul.f32 %v369, 1.442695
        %v375 = vpow.pop %v374
        %v376 = vmul.f32 %v370, 1.442695
        %v377 = vpow.pop %v376
        %v378 = vmul.f32 %v371, 1.442695
        %v379 = vpow.pop %v378
        %v380 = vmul.f32 %v373, %v360
        %v381 = vmul.f32 %v375, %v361
        %v382 = vmul.f32 %v377, %v362
        %v383 = vmul.f32 %v379, %v363
        %v384 = vld [vmem:[#allocation2] sm:$0x3]
        %vm385 = vcmask 1041408
        %v386 = vsel %vm385, %v380, 0.0
        %v387 = vsel %vm385, %v381, 0.0
        %v388 = vadd.f32 %v386, %v387
        %v389 = vsel %vm385, %v382, 0.0
        %v390 = vadd.f32 %v388, %v389
        %v391 = vsel %vm385, %v383, 0.0
        %v392 = vadd.f32 %v390, %v391
        %v393 = vadd.f32 %v384, %v392
        %394 = vst [vmem:[#allocation2] sm:$0x3] %v393
        %v395 = vsel %vm385, %v272, -inf
        %v396 = vsel %vm385, %v273, -inf
        %v397 = vsel %vm385, %v274, -inf
        %v398 = vsel %vm385, %v275, -inf
        %v399 = vmax.f32 %v395, %v396
        %v400 = vmax.f32 %v397, %v398
        %v401 = vmax.f32 %v399, %v400
        %v402 = vsub.f32 %v272, %v401
        %v403 = vsub.f32 %v273, %v401
        %v404 = vsub.f32 %v274, %v401
        %v405 = vsub.f32 %v275, %v401
        %v406 = vmul.f32 %v402, 1.442695
        %v407 = vpow.pop %v406
        %v408 = vmul.f32 %v403, 1.442695
        %v409 = vpow.pop %v408
        %v410 = vmul.f32 %v404, 1.442695
        %v411 = vpow.pop %v410
        %v412 = vmul.f32 %v405, 1.442695
        %v413 = vpow.pop %v412
        %v414 = vsel %vm385, %v407, 0.0
        %v415 = vsel %vm385, %v409, 0.0
        %v416 = vadd.f32 %v414, %v415
        %v417 = vsel %vm385, %v411, 0.0
        %v418 = vadd.f32 %v416, %v417
        %v419 = vsel %vm385, %v413, 0.0
        %v420 = vadd.f32 %v418, %v419
        %v421 = vrcp.pop %v420
        %v422 = vmul.f32 %v420, %v421
        %v423 = vsub.f32 2.0, %v422
        %v424 = vmul.f32 %v421, %v423
        %v425 = vmul.f32 %v407, %v424
        %v426 = vmul.f32 %v409, %v424
        %v427 = vmul.f32 %v411, %v424
        %v428 = vmul.f32 %v413, %v424
        %v429 = vld [vmem:[#allocation3] sm:$0x3]
        %v430 = vld [vmem:[#allocation3 + $0x2] sm:$0x3]
        %v431 = vld [vmem:[#allocation3 + $0x4] sm:$0x3]
        %v432 = vld [vmem:[#allocation3 + $0x6] sm:$0x3]
        %v433 = vmul.f32 %v425, %v280
        %v434 = vmul.f32 %v426, %v281
        %v435 = vmul.f32 %v427, %v282
        %v436 = vmul.f32 %v428, %v283
        %v437 = vadd.f32 %v429, %v433
        %v438 = vadd.f32 %v430, %v434
        %v439 = vadd.f32 %v431, %v435
        %v440 = vadd.f32 %v432, %v436
        %441 = vst [vmem:[#allocation3] sm:$0x3] %v437
        %442 = vst [vmem:[#allocation3 + $0x2] sm:$0x3] %v438
        %443 = vst [vmem:[#allocation3 + $0x4] sm:$0x3] %v439
        %444 = vst [vmem:[#allocation3 + $0x6] sm:$0x3] %v440
        %v445 = vld [vmem:[#allocation4] sm:$0x3]
        %v446 = vld [vmem:[#allocation4 + $0x2] sm:$0x3]
        %v447 = vld [vmem:[#allocation4 + $0x4] sm:$0x3]
        %v448 = vld [vmem:[#allocation4 + $0x6] sm:$0x3]
        %v449 = vmul.f32 %v425, 0.6
        %v450 = vmul.f32 %v426, 0.6
        %v451 = vmul.f32 %v427, 0.6
        %v452 = vmul.f32 %v428, 0.6
        %v453 = vmul.f32 %v280, 0.4
        %v454 = vmul.f32 %v281, 0.4
        %v455 = vmul.f32 %v282, 0.4
        %v456 = vmul.f32 %v283, 0.4
        %v457 = vadd.f32 %v449, %v453
        %v458 = vadd.f32 %v450, %v454
        %v459 = vadd.f32 %v451, %v455
        %v460 = vadd.f32 %v452, %v456
        %v461 = vadd.f32 %v445, %v457
        %v462 = vadd.f32 %v446, %v458
        %v463 = vadd.f32 %v447, %v459
        %v464 = vadd.f32 %v448, %v460
        %465 = vst [vmem:[#allocation4] sm:$0x3] %v461
        %466 = vst [vmem:[#allocation4 + $0x2] sm:$0x3] %v462
        %467 = vst [vmem:[#allocation4 + $0x4] sm:$0x3] %v463
        %468 = vst [vmem:[#allocation4 + $0x6] sm:$0x3] %v464
        // Predicated region
        $region41: #{tpu_custom_call.1} parent=27 // pred_check
          %p469 = pneg %p259
        $region42: #{tpu_custom_call.1} parent=27 // pred_check_branch
          %471 = sbr.rel (%p469) target = $region44
        $region43: #{tpu_custom_call.1} parent=27 // pred_region
          %v472 = vld [vmem:[#allocation2] sm:$0x3]
          %v473 = vsel %vm385, %v472, 0.0
          %v474 = vrot.slane %v473, 4
          %v475 = vadd.f32 %v473, %v474
          %v476 = vrot.slane %v475, 2
          %v477 = vadd.f32 %v475, %v476
          %v478 = vrot.slane %v477, 1
          %v479 = vadd.f32 %v477, %v478
          %480 = vst [vmem:[%s252] sm:$0x1] %v479
          %v481 = vld [vmem:[#allocation3] sm:$0x3]
          %v482 = vld [vmem:[#allocation3 + $0x2] sm:$0x3]
          %v483 = vld [vmem:[#allocation3 + $0x4] sm:$0x3]
          %v484 = vld [vmem:[#allocation3 + $0x6] sm:$0x3]
          %v485 = vsel %vm385, %v481, 0.0
          %v486 = vrot.slane %v485, 4
          %v487 = vadd.f32 %v485, %v486
          %v488 = vrot.slane %v487, 2
          %v489 = vadd.f32 %v487, %v488
          %v490 = vrot.slane %v489, 1
          %v491 = vadd.f32 %v489, %v490
          %v492 = vsel %vm385, %v482, 0.0
          %v493 = vrot.slane %v492, 4
          %v494 = vadd.f32 %v492, %v493
          %v495 = vrot.slane %v494, 2
          %v496 = vadd.f32 %v494, %v495
          %v497 = vrot.slane %v496, 1
          %v498 = vadd.f32 %v496, %v497
          %v499 = vsel %vm385, %v483, 0.0
          %v500 = vrot.slane %v499, 4
          %v501 = vadd.f32 %v499, %v500
          %v502 = vrot.slane %v501, 2
          %v503 = vadd.f32 %v501, %v502
          %v504 = vrot.slane %v503, 1
          %v505 = vadd.f32 %v503, %v504
          %v506 = vsel %vm385, %v484, 0.0
          %v507 = vrot.slane %v506, 4
          %v508 = vadd.f32 %v506, %v507
          %v509 = vrot.slane %v508, 2
          %v510 = vadd.f32 %v508, %v509
          %v511 = vrot.slane %v510, 1
          %v512 = vadd.f32 %v510, %v511
          %vm517 = vcmask 1041409
          %v518 = vsel %vm517, %v498, %v491
          %vm519 = vcmask 1042434
          %v520 = vsel %vm519, %v505, %v518
          %vm521 = vcmask 1043459
          %v522 = vsel %vm521, %v512, %v520
          %vm524 = vcmask 1043456
          %v525 = vsel %vm524, %v522, 0.0
          %526 = vadd.xlane.f32.xlu0 %v525
          %v527 = vpop.xlane.xlu0 %526
          %v528 = vld [vmem:[#allocation4] sm:$0x3]
          %v529 = vld [vmem:[#allocation4 + $0x2] sm:$0x3]
          %v530 = vld [vmem:[#allocation4 + $0x4] sm:$0x3]
          %v531 = vld [vmem:[#allocation4 + $0x6] sm:$0x3]
          %v532 = vsel %vm385, %v528, 0.0
          %v533 = vrot.slane %v532, 4
          %v534 = vadd.f32 %v532, %v533
          %v535 = vrot.slane %v534, 2
          %v536 = vadd.f32 %v534, %v535
          %v537 = vrot.slane %v536, 1
          %v538 = vadd.f32 %v536, %v537
          %v539 = vsel %vm385, %v529, 0.0
          %v540 = vrot.slane %v539, 4
          %v541 = vadd.f32 %v539, %v540
          %v542 = vrot.slane %v541, 2
          %v543 = vadd.f32 %v541, %v542
          %v544 = vrot.slane %v543, 1
          %v545 = vadd.f32 %v543, %v544
          %v546 = vsel %vm385, %v530, 0.0
          %v547 = vrot.slane %v546, 4
          %v548 = vadd.f32 %v546, %v547
          %v549 = vrot.slane %v548, 2
          %v550 = vadd.f32 %v548, %v549
          %v551 = vrot.slane %v550, 1
          %v552 = vadd.f32 %v550, %v551
          %v553 = vsel %vm385, %v531, 0.0
          %v554 = vrot.slane %v553, 4
          %v555 = vadd.f32 %v553, %v554
          %v556 = vrot.slane %v555, 2
          %v557 = vadd.f32 %v555, %v556
          %v558 = vrot.slane %v557, 1
          %v559 = vadd.f32 %v557, %v558
          %v564 = vsel %vm517, %v545, %v538
          %v565 = vsel %vm519, %v552, %v564
          %v566 = vsel %vm521, %v559, %v565
          %v568 = vsel %vm524, %v566, 0.0
          %569 = vadd.xlane.f32.xlu0 %v568
          %v570 = vpop.xlane.xlu0 %569
          %v571 = vadd.f32 %v527, 1e-05
          %v572 = vadd.f32 %v570, 1e-05
          %v573 = vrcp.pop %v572
          %v574 = vmul.f32 %v572, %v573
          %v575 = vsub.f32 1.0, %v574
          %v576 = vmul.f32 %v573, %v575
          %v577 = vadd.f32 %v573, %v576
          %vm578 = vweird.f32 %v572
          %vm579 = vweird.f32 %v573
          %vm580 = vmor %vm578, %vm579
          %v581 = vsel %vm580, %v573, %v577
          %v582 = vand.u32 2147483647, %v572
          %vm583 = vcmp.eq.f32.partialorder %v582, 8.507059e+37
          %v584 = vand.u32 %v572, 2147483648
          %v585 = vor.u32 1.1754944e-38, %v584
          %v586 = vsel %vm583, %v585, %v581
          %v587 = vmul.f32 %v571, %v586
          %v588 = vsub.f32 1.0, %v587
          %v589 = vsel %vm524, %v588, 0.0
          %v590 = vrot.slane %v589, 4
          %v591 = vadd.f32 %v589, %v590
          %v592 = vrot.slane %v591, 2
          %v593 = vadd.f32 %v591, %v592
          %v594 = vrot.slane %v593, 1
          %v595 = vadd.f32 %v593, %v594
          %v596 = vadd.f32 %v595, 0.0
          %597 = vst [vmem:[%s258] sm:$0x1] %v596
        $region44: #{tpu_custom_call.1} parent=27 // pred_fallthru
          _
        %s598 = sand.u32 %s103, 1
        %s599 = scalar_lea.sflag [#allocation7], %s598
        %s600 = sand.u32 %s103, 1
        %s601 = scalar_lea.vmem [#allocation10], %s600
        %s602 = sand.u32 %s129, 1
        %s603 = scalar_lea.sflag [#allocation12], %s602
        %s604 = sand.u32 %s129, 1
        %s605 = scalar_lea.vmem [#allocation11], %s604
        // Predicated region
        $region45: #{tpu_custom_call.1} parent=27 // pred_check
          %p606 = pneg %p113
        $region46: #{tpu_custom_call.1} parent=27 // pred_check_branch
          %608 = sbr.rel (%p606) target = $region48
        $region47: #{tpu_custom_call.1} parent=27 // pred_region
          %610 = vsyncadd %s599, 0
          %s611 = scalar_lea.hbm %s2, %s31
          %s613 = sshll.u32 %s601, 4
          %s614 = int_to_ptr.vmem [resolvable:$true] %s613
          %s615 = sshll.u32 %s611, 4
          %s616 = int_to_ptr.hbm [resolvable:$true] %s615
          %618 = dma.vmem_to_hbm [thread:$0]  %s614, 16, %s616, %s599
        $region48: #{tpu_custom_call.1} parent=27 // pred_fallthru
          _
        // Predicated region
        $region49: #{tpu_custom_call.1} parent=27 // pred_check
          %p619 = pneg %p139
        $region50: #{tpu_custom_call.1} parent=27 // pred_check_branch
          %621 = sbr.rel (%p619) target = $region52
        $region51: #{tpu_custom_call.1} parent=27 // pred_region
          %623 = vsyncadd %s603, 0
          %s624 = scalar_lea.hbm %s3, %s31
          %s626 = sshll.u32 %s605, 4
          %s627 = int_to_ptr.vmem [resolvable:$true] %s626
          %s628 = sshll.u32 %s624, 4
          %s629 = int_to_ptr.hbm [resolvable:$true] %s628
          %631 = dma.vmem_to_hbm [thread:$0]  %s627, 16, %s629, %s603
        $region52: #{tpu_custom_call.1} parent=27 // pred_fallthru
          _
      $region28: #{tpu_custom_call.1} parent=5 // pred_fallthru
        _
      %p632 = scmp.le.s32.totalorder 2, %s22
      // Predicated region
      $region53: #{tpu_custom_call.1} parent=5 // pred_check
        %p633 = pneg %p632
      $region54: #{tpu_custom_call.1} parent=5 // pred_check_branch
        %635 = sbr.rel (%p633) target = $region56
      $region55: #{tpu_custom_call.1} parent=5 // pred_region
        %s636 = ssub.s32 %s22, 2
        // Predicated region
        $region57: #{tpu_custom_call.1} parent=55 // pred_check
          %p637 = pneg %p119
        $region58: #{tpu_custom_call.1} parent=55 // pred_check_branch
          %639 = sbr.rel (%p637) target = $region60
        $region59: #{tpu_custom_call.1} parent=55 // pred_region
          %s640 = sand.u32 %s104, 1
          %s641 = scalar_lea.sflag [#allocation7], %s640
          %s642 = sand.u32 %s104, 1
          %s643 = scalar_lea.vmem [#allocation10], %s642
          %645 = dma.done %s641, 16
        $region60: #{tpu_custom_call.1} parent=55 // pred_fallthru
          _
        // Predicated region
        $region61: #{tpu_custom_call.1} parent=55 // pred_check
          %p646 = pneg %p145
        $region62: #{tpu_custom_call.1} parent=55 // pred_check_branch
          %648 = sbr.rel (%p646) target = $region64
        $region63: #{tpu_custom_call.1} parent=55 // pred_region
          %s649 = sand.u32 %s130, 1
          %s650 = scalar_lea.sflag [#allocation12], %s649
          %s651 = sand.u32 %s130, 1
          %s652 = scalar_lea.vmem [#allocation11], %s651
          %654 = dma.done %s650, 16
        $region64: #{tpu_custom_call.1} parent=55 // pred_fallthru
          _
      $region56: #{tpu_custom_call.1} parent=5 // pred_fallthru
        _
    $region6: #{tpu_custom_call.1} parent=1 // loop_footer
      %s26 = sadd.s32 1, %s22
    $region7: #{tpu_custom_call.1} parent=1 // loop_footer_branch
      %21 = sbr.rel target = $region3
    $region8: #{tpu_custom_call.1} parent=1 // loop_exit
      _
    %655 = vsyncpa [#allocation6], 1
    %s656 = scalar_lea.sflag [#allocation6], 1
    %657 = vsyncpa %s656, 1
    %658 = vsyncpa [#allocation9], 1
    %s659 = scalar_lea.sflag [#allocation9], 1
    %660 = vsyncpa %s659, 1
    %661 = vsyncpa [#allocation7], 1
    %s662 = scalar_lea.sflag [#allocation7], 1
    %663 = vsyncpa %s662, 1
    %664 = vsyncpa [#allocation12], 1
    %s665 = scalar_lea.sflag [#allocation12], 1
    %666 = vsyncpa %s665, 1

</llo_original>
